<compile_context>
chip_gen: v6e
topology: v6e:2x2x1
jax: 0.10.0
libtpu: 0.0.40
codegen_flags: <defaults>
</compile_context>

<pallas_src>
import math
import jax
import jax.numpy as jnp
from jax.experimental import pallas as pl
from jax.experimental.pallas import tpu as pltpu

D_X = 1            # dimensionality of the "time" input variable
D_Y = 1            # dimensionality of the observed trajectory variable
HID = 128          # hidden width used throughout the CNMP
MXU_DTYPE = jnp.bfloat16   # matmul-operand dtype (f32 accumulation everywhere)

FUSE_MAX_TGT = 512   # up to this many targets: one fused single-block kernel
MAX_TILE_M = 2048    # per-grid-step decoder tile cap for the gridded path
MIN_GRID_STEPS = 4   # >= 2 steps per TensorCore on v7x dual-TC chips


# ---------------------------------------------------------------------------
# Shared in-kernel compute helpers (traced inside kernels only)
# ---------------------------------------------------------------------------
def _encode(obs, enc_small, w2, w3, w4r):
    """encoder + mean + r-half of decoder L1 -> d_r (1, HID) f32."""
    d_in = D_X + D_Y
    b1 = enc_small[d_in:d_in + 1, :]
    b2 = enc_small[d_in + 1:d_in + 2, :]
    b3 = enc_small[d_in + 2:d_in + 3, :]
    b4 = enc_small[d_in + 3:d_in + 4, :]

    # Encoder L1: K = d_x + d_y (= 2) contraction as VPU broadcast-FMAs.
    h = b1
    for c in range(d_in):
        h = h + obs[:, c:c + 1] * enc_small[c:c + 1, :]
    h = jnp.maximum(h, 0.0)                               # (n_obs, HID) f32

    # Encoder L2 / L3: bf16 MXU matmuls, f32 accumulation, f32 elementwise.
    h = jnp.maximum(
        jnp.dot(h.astype(MXU_DTYPE), w2, preferred_element_type=jnp.float32)
        + b2, 0.0)
    r = jnp.dot(h.astype(MXU_DTYPE), w3,
                preferred_element_type=jnp.float32) + b3

    # Mean over observations (f32 cross-sublane reduction).
    r_mean = jnp.mean(r, axis=0, keepdims=True)           # (1, HID) f32

    # Decoder L1, r-half: runs ONCE per forward -> keep it in full f32.
    return jnp.dot(r_mean, w4r, preferred_element_type=jnp.float32) + b4


def _decode(d_r, tgt, dec_small, w5, w6):
    """decoder over a tile of target rows; d_r is the precomputed r-half."""
    b5 = dec_small[D_X:D_X + 1, :]
    b6 = dec_small[D_X + 1:D_X + 2, :]                    # zero-padded to HID

    # Decoder L1, target-half: K = d_x (= 1) VPU broadcast-FMA; d_r broadcasts.
    h = d_r
    for c in range(D_X):
        h = h + tgt[:, c:c + 1] * dec_small[c:c + 1, :]
    h = jnp.maximum(h, 0.0)                               # (tile_m, HID)

    # Decoder L2 / L3 (output lane-padded to HID columns).
    h = jnp.maximum(
        jnp.dot(h.astype(MXU_DTYPE), w5, preferred_element_type=jnp.float32)
        + b5, 0.0)
    return jnp.dot(h.astype(MXU_DTYPE), w6,
                   preferred_element_type=jnp.float32) + b6


# ---------------------------------------------------------------------------
# Kernels
# ---------------------------------------------------------------------------
def fused_kernel(obs_ref, tgt_ref, enc_small_ref, enc_big_ref, w4r_ref,
                 dec_small_ref, dec_big_ref, out_ref):
    """Small-problem path: encoder + mean + full decoder in one block."""
    d_r = _encode(obs_ref[...], enc_small_ref[...],
                  enc_big_ref[0], enc_big_ref[1], w4r_ref[...])
    out_ref[...] = _decode(d_r, tgt_ref[...], dec_small_ref[...],
                           dec_big_ref[0], dec_big_ref[1])


def encoder_kernel(obs_ref, enc_small_ref, enc_big_ref, w4r_ref, dr_ref):
    """Stage 1 (large-problem path): produce d_r = r_mean @ W4_r + b4."""
    dr_ref[...] = _encode(obs_ref[...], enc_small_ref[...],
                          enc_big_ref[0], enc_big_ref[1], w4r_ref[...])


def decoder_kernel(dr_ref, tgt_ref, dec_small_ref, dec_big_ref, out_ref):
    """Stage 2 (large-problem path): decoder over a tile of target rows."""
    out_ref[...] = _decode(dr_ref[...], tgt_ref[...], dec_small_ref[...],
                           dec_big_ref[0], dec_big_ref[1])


# ---------------------------------------------------------------------------
# Host-side parameter packing (call ONCE per parameter set, reuse the result)
# ---------------------------------------------------------------------------
def pack_params(params):
    (w1, b1, w2, b2, w3, b3, w4, b4, w5, b5, w6, b6) = params
    d_in = D_X + D_Y
    assert d_in + 4 <= 8 and D_X + 2 <= 8 and 2 * D_Y <= HID

    enc_small = jnp.zeros((8, HID), jnp.float32)
    enc_small = enc_small.at[0:d_in, :].set(w1)          # w1 rows (VPU path)
    enc_small = enc_small.at[d_in, :].set(b1[0])
    enc_small = enc_small.at[d_in + 1, :].set(b2[0])
    enc_small = enc_small.at[d_in + 2, :].set(b3[0])
    enc_small = enc_small.at[d_in + 3, :].set(b4[0])
    enc_big = jnp.stack([w2, w3]).astype(MXU_DTYPE)      # (2, HID, HID) bf16

    w4_r, w4_t = w4[:HID, :], w4[HID:, :]                # (HID,HID), (d_x,HID)
    w4r = w4_r.astype(jnp.float32)                       # f32: used once/forward

    w6_pad = jnp.zeros((HID, HID), jnp.float32).at[:, :2 * D_Y].set(w6)
    b6_pad = jnp.zeros((HID,), jnp.float32).at[:2 * D_Y].set(b6[0])

    dec_small = jnp.zeros((8, HID), jnp.float32)
    dec_small = dec_small.at[0:D_X, :].set(w4_t)         # w4 target rows (VPU)
    dec_small = dec_small.at[D_X, :].set(b5[0])
    dec_small = dec_small.at[D_X + 1, :].set(b6_pad)
    dec_big = jnp.stack([w5, w6_pad]).astype(MXU_DTYPE)  # (2, HID, HID) bf16
    return enc_small, enc_big, w4r, dec_small, dec_big


def _round_up(x, m):
    return ((x + m - 1) // m) * m


def _cdiv(a, b):
    return -(-a // b)


# ---------------------------------------------------------------------------
# Forward pass
# ---------------------------------------------------------------------------
def cnmp_forward(observations, target_t, packed_params):
    """observations: (n_obs, d_x + d_y) f32; target_t: (n_tgt, d_x) f32.
    packed_params: result of pack_params(params) (packed once, reused)."""
    enc_small, enc_big, w4r, dec_small, dec_big = packed_params
    n_obs = observations.shape[0]
    n_tgt = target_t.shape[0]

    # TODO(synk): for very large n_obs, grid the encoder over observation-row
    # tiles with a partial-sum accumulator instead of one full block.

    if n_tgt <= FUSE_MAX_TGT:
        # ---- small problem: one fused kernel, no r_mean/d_r HBM round trip --
        n_pad = _round_up(max(n_tgt, 8), 8)
        tgt_pad = target_t if n_pad == n_tgt else (
            jnp.zeros((n_pad, D_X), jnp.float32).at[:n_tgt, :].set(target_t))
        out_pad = pl.pallas_call(
            fused_kernel,
            out_shape=jax.ShapeDtypeStruct((n_pad, HID), jnp.float32),
            in_specs=[
                pl.BlockSpec((n_obs, D_X + D_Y), lambda: (0, 0)),
                pl.BlockSpec((n_pad, D_X), lambda: (0, 0)),
                pl.BlockSpec((8, HID), lambda: (0, 0)),
                pl.BlockSpec((2, HID, HID), lambda: (0, 0, 0)),
                pl.BlockSpec((HID, HID), lambda: (0, 0)),
                pl.BlockSpec((8, HID), lambda: (0, 0)),
                pl.BlockSpec((2, HID, HID), lambda: (0, 0, 0)),
            ],
            out_specs=pl.BlockSpec((n_pad, HID), lambda: (0, 0)),
        )(observations, tgt_pad, enc_small, enc_big, w4r, dec_small, dec_big)
        return out_pad[:n_tgt, :2 * D_Y]

    # ---- large problem, stage 1: encoder + mean + r-half of decoder L1 ------
    d_r = pl.pallas_call(
        encoder_kernel,
        out_shape=jax.ShapeDtypeStruct((1, HID), jnp.float32),
        in_specs=[
            pl.BlockSpec((n_obs, D_X + D_Y), lambda: (0, 0)),
            pl.BlockSpec((8, HID), lambda: (0, 0)),
            pl.BlockSpec((2, HID, HID), lambda: (0, 0, 0)),
            pl.BlockSpec((HID, HID), lambda: (0, 0)),
        ],
        out_specs=pl.BlockSpec((1, HID), lambda: (0, 0)),
    )(observations, enc_small, enc_big, w4r)

    # ---- stage 2: decoder, gridded + "parallel" over target-row tiles -------
    # tile_m chosen so the grid has >= MIN_GRID_STEPS steps (keeps both v7x
    # TensorCores busy with >= 2 pipelined steps each) while staying <= 2048
    # rows/step; far larger tiles than before to amortize per-step overhead.
    n8 = _round_up(n_tgt, 8)
    tile_m = min(MAX_TILE_M, _round_up(_cdiv(n8, MIN_GRID_STEPS), 8))
    n_pad = _round_up(n_tgt, tile_m)
    tgt_pad = target_t if n_pad == n_tgt else (
        jnp.zeros((n_pad, D_X), jnp.float32).at[:n_tgt, :].set(target_t))

    out_pad = pl.pallas_call(
        decoder_kernel,
        out_shape=jax.ShapeDtypeStruct((n_pad, HID), jnp.float32),
        grid_spec=pltpu.PrefetchScalarGridSpec(
            num_scalar_prefetch=0,
            grid=(n_pad // tile_m,),
            in_specs=[
                pl.BlockSpec((1, HID), lambda i: (0, 0)),          # d_r
                pl.BlockSpec((tile_m, D_X), lambda i: (i, 0)),     # targets
                pl.BlockSpec((8, HID), lambda i: (0, 0)),          # small pack
                pl.BlockSpec((2, HID, HID), lambda i: (0, 0, 0)),  # big pack
            ],
            out_specs=pl.BlockSpec((tile_m, HID), lambda i: (i, 0)),
        ),
        compiler_params=pltpu.CompilerParams(
            dimension_semantics=("parallel",)),
    )(d_r, tgt_pad, dec_small, dec_big)

    # Lane-dense (tile_m, 128) output slab; slice to the real (n_tgt, 2*d_y).
    return out_pad[:n_tgt, :2 * D_Y]


# ---------------------------------------------------------------------------
# Parameter init (PyTorch nn.Linear default: U(-1/sqrt(fan_in), 1/sqrt(fan_in)))
# Weights stored as (in_features, out_features); biases as (1, out_features).
# ---------------------------------------------------------------------------
def init_params(key):
    dims = [
        (D_X + D_Y, HID),   # encoder L1
        (HID, HID),         # encoder L2
        (HID, HID),         # encoder L3
        (HID + D_X, HID),   # decoder L1
        (HID, HID),         # decoder L2
        (HID, 2 * D_Y),     # decoder L3
    ]
    params = []
    for (fan_in, fan_out) in dims:
        key, kw, kb = jax.random.split(key, 3)
        bound = 1.0 / math.sqrt(fan_in)
        w = jax.random.uniform(kw, (fan_in, fan_out), jnp.float32, -bound, bound)
        b = jax.random.uniform(kb, (1, fan_out), jnp.float32, -bound, bound)
        params += [w, b]
    return tuple(params)


def cnmp_reference(observations, target_t, params):
    """Pure-JAX f32 reference replicating the PyTorch forward verbatim."""
    w1, b1, w2, b2, w3, b3, w4, b4, w5, b5, w6, b6 = params
    h = jnp.maximum(observations @ w1 + b1, 0.0)
    h = jnp.maximum(h @ w2 + b2, 0.0)
    r = h @ w3 + b3
    r_mean = jnp.mean(r, axis=0)
    r_mean = jnp.tile(r_mean[None, :], (target_t.shape[0], 1))
    concat = jnp.concatenate([r_mean, target_t], axis=-1)
    h = jnp.maximum(concat @ w4 + b4, 0.0)
    h = jnp.maximum(h @ w5 + b5, 0.0)
    return h @ w6 + b6


if __name__ == "__main__":
    key = jax.random.PRNGKey(0)
    key, k_par = jax.random.split(key)
    params = init_params(k_par)
    packed = pack_params(params)          # packed once, reused across calls

    fwd = jax.jit(cnmp_forward)

    # ---- small problem -> fused single-kernel path --------------------------
    key, k_obs, k_tgt = jax.random.split(key, 3)
    n_obs, n_tgt = 8, 8
    observations = jax.random.normal(k_obs, (n_obs, D_X + D_Y), jnp.float32)
    target_t = jax.random.normal(k_tgt, (n_tgt, D_X), jnp.float32)
    out = jax.block_until_ready(fwd(observations, target_t, packed))
    ref = cnmp_reference(observations, target_t, params)
    assert out.shape == (n_tgt, 2 * D_Y), out.shape
    # Tolerance loosened because the 128x128 matmuls use bf16 operands
    # (f32 accumulation); biases/ReLU/mean/d_r remain exact f32.
    assert jnp.allclose(out, ref, rtol=5e-2, atol=5e-2), "fused path mismatch"

    # ---- larger target set -> two-stage gridded decoder path ----------------
    key, k_obs, k_tgt = jax.random.split(key, 3)
    n_obs, n_tgt = 16, 700
    observations = jax.random.normal(k_obs, (n_obs, D_X + D_Y), jnp.float32)
    target_t = jax.random.normal(k_tgt, (n_tgt, D_X), jnp.float32)
    out = jax.block_until_ready(fwd(observations, target_t, packed))
    ref = cnmp_reference(observations, target_t, params)
    assert out.shape == (n_tgt, 2 * D_Y), out.shape
    assert jnp.allclose(out, ref, rtol=5e-2, atol=5e-2), "gridded path mismatch"

    print("KERNEL_OK")
</pallas_src>

<mosaic_0001>
module attributes {stable_mosaic.version = 11 : i64} {
  func.func @fused_kernel(%arg0: memref<8x2xf32, #tpu.memory_space<vmem>>, %arg1: memref<8x1xf32, #tpu.memory_space<vmem>>, %arg2: memref<8x128xf32, #tpu.memory_space<vmem>>, %arg3: memref<2x128x128xbf16, #tpu.memory_space<vmem>>, %arg4: memref<128x128xf32, #tpu.memory_space<vmem>>, %arg5: memref<8x128xf32, #tpu.memory_space<vmem>>, %arg6: memref<2x128x128xbf16, #tpu.memory_space<vmem>>, %arg7: memref<8x128xf32, #tpu.memory_space<vmem>>) attributes {dimension_semantics = [], scalar_prefetch = 0 : i64, scratch_operands = 0 : i64, tpu.core_type = #tpu.core_type<tc>} {
    %c0 = arith.constant 0 : index
    %c0_0 = arith.constant 0 : index
    %0 = vector.load %arg0[%c0, %c0_0] : memref<8x2xf32, #tpu.memory_space<vmem>>, vector<8x2xf32>
    %c0_1 = arith.constant 0 : index
    %c0_2 = arith.constant 0 : index
    %1 = vector.load %arg2[%c0_1, %c0_2] : memref<8x128xf32, #tpu.memory_space<vmem>>, vector<8x128xf32>
    %c0_3 = arith.constant 0 : index
    %c0_4 = arith.constant 0 : index
    %c0_5 = arith.constant 0 : index
    %2 = vector.load %arg3[%c0_3, %c0_4, %c0_5] : memref<2x128x128xbf16, #tpu.memory_space<vmem>>, vector<1x128x128xbf16>
    %3 = vector.shape_cast %2 : vector<1x128x128xbf16> to vector<128x128xbf16>
    %c1 = arith.constant 1 : index
    %c0_6 = arith.constant 0 : index
    %c0_7 = arith.constant 0 : index
    %4 = vector.load %arg3[%c1, %c0_6, %c0_7] : memref<2x128x128xbf16, #tpu.memory_space<vmem>>, vector<1x128x128xbf16>
    %5 = vector.shape_cast %4 : vector<1x128x128xbf16> to vector<128x128xbf16>
    %c0_8 = arith.constant 0 : index
    %c0_9 = arith.constant 0 : index
    %6 = vector.load %arg4[%c0_8, %c0_9] : memref<128x128xf32, #tpu.memory_space<vmem>>, vector<128x128xf32>
    %7 = vector.extract_strided_slice %1 {offsets = [2, 0], sizes = [1, 128], strides = [1, 1]} : vector<8x128xf32> to vector<1x128xf32>
    %8 = vector.extract_strided_slice %1 {offsets = [3, 0], sizes = [1, 128], strides = [1, 1]} : vector<8x128xf32> to vector<1x128xf32>
    %9 = vector.extract_strided_slice %1 {offsets = [4, 0], sizes = [1, 128], strides = [1, 1]} : vector<8x128xf32> to vector<1x128xf32>
    %10 = vector.extract_strided_slice %1 {offsets = [5, 0], sizes = [1, 128], strides = [1, 1]} : vector<8x128xf32> to vector<1x128xf32>
    %11 = vector.extract_strided_slice %0 {offsets = [0, 0], sizes = [8, 1], strides = [1, 1]} : vector<8x2xf32> to vector<8x1xf32>
    %12 = vector.extract_strided_slice %1 {offsets = [0, 0], sizes = [1, 128], strides = [1, 1]} : vector<8x128xf32> to vector<1x128xf32>
    %13 = vector.broadcast %11 : vector<8x1xf32> to vector<8x128xf32>
    %14 = vector.broadcast %12 : vector<1x128xf32> to vector<8x128xf32>
    %15 = arith.mulf %13, %14 : vector<8x128xf32>
    %16 = vector.broadcast %7 : vector<1x128xf32> to vector<8x128xf32>
    %17 = arith.addf %16, %15 : vector<8x128xf32>
    %18 = vector.extract_strided_slice %0 {offsets = [0, 1], sizes = [8, 1], strides = [1, 1]} : vector<8x2xf32> to vector<8x1xf32>
    %19 = vector.extract_strided_slice %1 {offsets = [1, 0], sizes = [1, 128], strides = [1, 1]} : vector<8x128xf32> to vector<1x128xf32>
    %20 = vector.broadcast %18 : vector<8x1xf32> to vector<8x128xf32>
    %21 = vector.broadcast %19 : vector<1x128xf32> to vector<8x128xf32>
    %22 = arith.mulf %20, %21 : vector<8x128xf32>
    %23 = arith.addf %17, %22 : vector<8x128xf32>
    %cst = arith.constant 0.000000e+00 : f32
    %24 = vector.broadcast %cst : f32 to vector<8x128xf32>
    %25 = arith.maximumf %23, %24 : vector<8x128xf32>
    %26 = arith.truncf %25 : vector<8x128xf32> to vector<8x128xbf16>
    %cst_10 = arith.constant dense<0.000000e+00> : vector<8x128xf32>
    %27 = tpu.matmul %26, %3, %cst_10 {dimension_numbers = #tpu.dot_dimension_numbers<[1], [0], [0], [1], [0, 0, 1, 1], [], []>} : vector<8x128xbf16>, vector<128x128xbf16>, vector<8x128xf32> -> vector<8x128xf32>
    %28 = vector.broadcast %8 : vector<1x128xf32> to vector<8x128xf32>
    %29 = arith.addf %27, %28 : vector<8x128xf32>
    %cst_11 = arith.constant 0.000000e+00 : f32
    %30 = vector.broadcast %cst_11 : f32 to vector<8x128xf32>
    %31 = arith.maximumf %29, %30 : vector<8x128xf32>
    %32 = arith.truncf %31 : vector<8x128xf32> to vector<8x128xbf16>
    %cst_12 = arith.constant dense<0.000000e+00> : vector<8x128xf32>
    %33 = tpu.matmul %32, %5, %cst_12 {dimension_numbers = #tpu.dot_dimension_numbers<[1], [0], [0], [1], [0, 0, 1, 1], [], []>} : vector<8x128xbf16>, vector<128x128xbf16>, vector<8x128xf32> -> vector<8x128xf32>
    %34 = vector.broadcast %9 : vector<1x128xf32> to vector<8x128xf32>
    %35 = arith.addf %33, %34 : vector<8x128xf32>
    %cst_13 = arith.constant dense<0.000000e+00> : vector<128xf32>
    %36 = vector.multi_reduction <add>, %35, %cst_13 [0] : vector<8x128xf32> to vector<128xf32>
    %37 = vector.shape_cast %36 : vector<128xf32> to vector<1x128xf32>
    %cst_14 = arith.constant 8.000000e+00 : f32
    %38 = vector.broadcast %cst_14 : f32 to vector<1x128xf32>
    %39 = arith.divf %37, %38 : vector<1x128xf32>
    %cst_15 = arith.constant dense<0.000000e+00> : vector<1x128xf32>
    %40 = tpu.matmul %39, %6, %cst_15 {dimension_numbers = #tpu.dot_dimension_numbers<[1], [0], [0], [1], [0, 0, 1, 1], [], []>} : vector<1x128xf32>, vector<128x128xf32>, vector<1x128xf32> -> vector<1x128xf32>
    %41 = arith.addf %40, %10 : vector<1x128xf32>
    %c0_16 = arith.constant 0 : index
    %c0_17 = arith.constant 0 : index
    %42 = vector.load %arg1[%c0_16, %c0_17] : memref<8x1xf32, #tpu.memory_space<vmem>>, vector<8x1xf32>
    %c0_18 = arith.constant 0 : index
    %c0_19 = arith.constant 0 : index
    %43 = vector.load %arg5[%c0_18, %c0_19] : memref<8x128xf32, #tpu.memory_space<vmem>>, vector<8x128xf32>
    %c0_20 = arith.constant 0 : index
    %c0_21 = arith.constant 0 : index
    %c0_22 = arith.constant 0 : index
    %44 = vector.load %arg6[%c0_20, %c0_21, %c0_22] : memref<2x128x128xbf16, #tpu.memory_space<vmem>>, vector<1x128x128xbf16>
    %45 = vector.shape_cast %44 : vector<1x128x128xbf16> to vector<128x128xbf16>
    %c1_23 = arith.constant 1 : index
    %c0_24 = arith.constant 0 : index
    %c0_25 = arith.constant 0 : index
    %46 = vector.load %arg6[%c1_23, %c0_24, %c0_25] : memref<2x128x128xbf16, #tpu.memory_space<vmem>>, vector<1x128x128xbf16>
    %47 = vector.shape_cast %46 : vector<1x128x128xbf16> to vector<128x128xbf16>
    %48 = vector.extract_strided_slice %43 {offsets = [1, 0], sizes = [1, 128], strides = [1, 1]} : vector<8x128xf32> to vector<1x128xf32>
    %49 = vector.extract_strided_slice %43 {offsets = [2, 0], sizes = [1, 128], strides = [1, 1]} : vector<8x128xf32> to vector<1x128xf32>
    %50 = vector.extract_strided_slice %43 {offsets = [0, 0], sizes = [1, 128], strides = [1, 1]} : vector<8x128xf32> to vector<1x128xf32>
    %51 = vector.broadcast %42 : vector<8x1xf32> to vector<8x128xf32>
    %52 = vector.broadcast %50 : vector<1x128xf32> to vector<8x128xf32>
    %53 = arith.mulf %51, %52 : vector<8x128xf32>
    %54 = vector.broadcast %41 : vector<1x128xf32> to vector<8x128xf32>
    %55 = arith.addf %54, %53 : vector<8x128xf32>
    %cst_26 = arith.constant 0.000000e+00 : f32
    %56 = vector.broadcast %cst_26 : f32 to vector<8x128xf32>
    %57 = arith.maximumf %55, %56 : vector<8x128xf32>
    %58 = arith.truncf %57 : vector<8x128xf32> to vector<8x128xbf16>
    %cst_27 = arith.constant dense<0.000000e+00> : vector<8x128xf32>
    %59 = tpu.matmul %58, %45, %cst_27 {dimension_numbers = #tpu.dot_dimension_numbers<[1], [0], [0], [1], [0, 0, 1, 1], [], []>} : vector<8x128xbf16>, vector<128x128xbf16>, vector<8x128xf32> -> vector<8x128xf32>
    %60 = vector.broadcast %48 : vector<1x128xf32> to vector<8x128xf32>
    %61 = arith.addf %59, %60 : vector<8x128xf32>
    %cst_28 = arith.constant 0.000000e+00 : f32
    %62 = vector.broadcast %cst_28 : f32 to vector<8x128xf32>
    %63 = arith.maximumf %61, %62 : vector<8x128xf32>
    %64 = arith.truncf %63 : vector<8x128xf32> to vector<8x128xbf16>
    %cst_29 = arith.constant dense<0.000000e+00> : vector<8x128xf32>
    %65 = tpu.matmul %64, %47, %cst_29 {dimension_numbers = #tpu.dot_dimension_numbers<[1], [0], [0], [1], [0, 0, 1, 1], [], []>} : vector<8x128xbf16>, vector<128x128xbf16>, vector<8x128xf32> -> vector<8x128xf32>
    %66 = vector.broadcast %49 : vector<1x128xf32> to vector<8x128xf32>
    %67 = arith.addf %65, %66 : vector<8x128xf32>
    %c0_30 = arith.constant 0 : index
    %c0_31 = arith.constant 0 : index
    %68 = vector.load %arg7[%c0_30, %c0_31] : memref<8x128xf32, #tpu.memory_space<vmem>>, vector<8x128xf32>
    tpu.vector_store %arg7[%c0_30, %c0_31], %67 {strides = array<i32>} : memref<8x128xf32, #tpu.memory_space<vmem>>, vector<8x128xf32>,
    return
  }
}

</mosaic_0001>

<llo_original>
// kernel: cnmp_forward.1
$region0: #{cnmp_forward.1}
  #allocation0 [shape = 'u32[]', space=smem, size = 0x4, offset = 0x4, fixed_abs, tag = 'smem constant byte address 0x4 - core index']
  #allocation1 [shape = 'u32[144,128]{1,0:T(1,128)}', space=vmem, size = 0x12000, scoped, tag = 'internal scratch']
  %s0 = inlined_call_operand.vmem [shape: f32[8,2], index: 0, kind: input, shape index: {}]
  %s1 = inlined_call_operand.vmem [shape: f32[8,1], index: 1, kind: input, shape index: {}]
  %s2 = inlined_call_operand.vmem [shape: f32[8,128], index: 2, kind: input, shape index: {}]
  %s3 = inlined_call_operand.hbm [shape: bf16[2,128,128], index: 3, kind: input, shape index: {}]
  %s4 = inlined_call_operand.hbm [shape: f32[128,128], index: 4, kind: input, shape index: {}]
  %s5 = inlined_call_operand.vmem [shape: f32[8,128], index: 5, kind: input, shape index: {}]
  %s6 = inlined_call_operand.hbm [shape: bf16[2,128,128], index: 6, kind: input, shape index: {}]
  %s7 = inlined_call_operand.vmem [shape: f32[8,128], index: 7, kind: output, shape index: {}]
  %s8 = sld [smem:[#allocation0]]
  $region50: #{cnmp_forward.1} parent=0
    _
  %s10 = ssub.s32 1, %s8
  %s11 = scalar_select 0, %s10, %s8
  $region1: #{cnmp_forward.1} parent=0
    #allocation2 [shape = 'u8[65536]{0}', space=vmem, size = 0x10000, scoped, tag = 'input window, operand 3, single buffered']
    #allocation3 [shape = 's32[1]{0}', space=sflag, size = 0x4, scoped, tag = 'scoped memory for cnmp_forward.1']
    #allocation4 [shape = 'u8[65536]{0}', space=vmem, size = 0x10000, scoped, tag = 'input window, operand 4, single buffered']
    #allocation5 [shape = 's32[1]{0}', space=sflag, size = 0x4, scoped, tag = 'scoped memory for cnmp_forward.1']
    #allocation6 [shape = 'u8[65536]{0}', space=vmem, size = 0x10000, scoped, tag = 'input window, operand 6, single buffered']
    %12 = vsyncpa [#allocation3], 0
    %13 = vsyncpa [#allocation5], 0
    // Predicated region
    $region2: #{cnmp_forward.1} parent=1 // pred_check
      _
    $region3: #{cnmp_forward.1} parent=1 // pred_check_branch
      %15 = sbr.rel (0) target = $region5
    $region4: #{cnmp_forward.1} parent=1 // pred_region
      _
    $region5: #{cnmp_forward.1} parent=1 // pred_fallthru
      _
    // Predicated region
    $region6: #{cnmp_forward.1} parent=1 // pred_check
      _
    $region7: #{cnmp_forward.1} parent=1 // pred_check_branch
      %17 = sbr.rel (0) target = $region9
    $region8: #{cnmp_forward.1} parent=1 // pred_region
      _
    $region9: #{cnmp_forward.1} parent=1 // pred_fallthru
      _
    // Predicated region
    $region10: #{cnmp_forward.1} parent=1 // pred_check
      _
    $region11: #{cnmp_forward.1} parent=1 // pred_check_branch
      %19 = sbr.rel (0) target = $region13
    $region12: #{cnmp_forward.1} parent=1 // pred_region
      _
    $region13: #{cnmp_forward.1} parent=1 // pred_fallthru
      _
    // Predicated region
    $region14: #{cnmp_forward.1} parent=1 // pred_check
      _
    $region15: #{cnmp_forward.1} parent=1 // pred_check_branch
      %21 = sbr.rel (0) target = $region17
    $region16: #{cnmp_forward.1} parent=1 // pred_region
      %s23 = ssub.s32 2048, 2048
      %24 = vsyncadd [#allocation3], %s23
      %s25 = sshll.u32 [#allocation2], 4
      %s26 = int_to_ptr.vmem [resolvable:$true] %s25
      %31 = dma.hbm_to_vmem [thread:$0]  %s3, 2048, %s26, [#allocation3], 64, 64, 4
    $region17: #{cnmp_forward.1} parent=1 // pred_fallthru
      _
    // Predicated region
    $region18: #{cnmp_forward.1} parent=1 // pred_check
      _
    $region19: #{cnmp_forward.1} parent=1 // pred_check_branch
      %33 = sbr.rel (0) target = $region21
    $region20: #{cnmp_forward.1} parent=1 // pred_region
      %s35 = ssub.s32 2048, 2048
      %36 = vsyncadd [#allocation5], %s35
      %s37 = sshll.u32 [#allocation4], 4
      %s38 = int_to_ptr.vmem [resolvable:$true] %s37
      %43 = dma.hbm_to_vmem [thread:$0]  %s4, 2048, %s38, [#allocation5], 128, 128, 8
    $region21: #{cnmp_forward.1} parent=1 // pred_fallthru
      _
    // Predicated region
    $region22: #{cnmp_forward.1} parent=1 // pred_check
      _
    $region23: #{cnmp_forward.1} parent=1 // pred_check_branch
      %45 = sbr.rel (0) target = $region25
    $region24: #{cnmp_forward.1} parent=1 // pred_region
      _
    $region25: #{cnmp_forward.1} parent=1 // pred_fallthru
      _
    // Predicated region
    $region26: #{cnmp_forward.1} parent=1 // pred_check
      _
    $region27: #{cnmp_forward.1} parent=1 // pred_check_branch
      %47 = sbr.rel (0) target = $region29
    $region28: #{cnmp_forward.1} parent=1 // pred_region
      %s49 = ssub.s32 2048, 2048
      %50 = vsyncadd [#allocation5], %s49
      %s51 = sshll.u32 [#allocation6], 4
      %s52 = int_to_ptr.vmem [resolvable:$true] %s51
      %57 = dma.hbm_to_vmem [thread:$0]  %s6, 2048, %s52, [#allocation5], 64, 64, 4
    $region29: #{cnmp_forward.1} parent=1 // pred_fallthru
      _
    // Predicated region
    $region30: #{cnmp_forward.1} parent=1 // pred_check
      _
    $region31: #{cnmp_forward.1} parent=1 // pred_check_branch
      %59 = sbr.rel (0) target = $region33
    $region32: #{cnmp_forward.1} parent=1 // pred_region
      %60 = dma.done [#allocation3], 2048
    $region33: #{cnmp_forward.1} parent=1 // pred_fallthru
      _
    // Predicated region
    $region34: #{cnmp_forward.1} parent=1 // pred_check
      _
    $region35: #{cnmp_forward.1} parent=1 // pred_check_branch
      %62 = sbr.rel (0) target = $region37
    $region36: #{cnmp_forward.1} parent=1 // pred_region
      %63 = dma.done [#allocation5], 2048
    $region37: #{cnmp_forward.1} parent=1 // pred_fallthru
      _
    // Predicated region
    $region38: #{cnmp_forward.1} parent=1 // pred_check
      _
    $region39: #{cnmp_forward.1} parent=1 // pred_check_branch
      %65 = sbr.rel (0) target = $region41
    $region40: #{cnmp_forward.1} parent=1 // pred_region
      %66 = dma.done [#allocation5], 2048
    $region41: #{cnmp_forward.1} parent=1 // pred_fallthru
      _
    %v68 = vld [vmem:[%s0] sm:$0xff]
    %v69 = vld [vmem:[%s2] sm:$0xff]
    %v70 = vld [vmem:[#allocation2] sm:$0xf]
    %v71 = vld [vmem:[#allocation2 + $0x4] sm:$0xf]
    %v72 = vld [vmem:[#allocation2 + $0x8] sm:$0xf]
    %v73 = vld [vmem:[#allocation2 + $0xc] sm:$0xf]
    %v74 = vld [vmem:[#allocation2 + $0x10] sm:$0xf]
    %v75 = vld [vmem:[#allocation2 + $0x14] sm:$0xf]
    %v76 = vld [vmem:[#allocation2 + $0x18] sm:$0xf]
    %v77 = vld [vmem:[#allocation2 + $0x1c] sm:$0xf]
    %v78 = vld [vmem:[#allocation2 + $0x20] sm:$0xf]
    %v79 = vld [vmem:[#allocation2 + $0x24] sm:$0xf]
    %v80 = vld [vmem:[#allocation2 + $0x28] sm:$0xf]
    %v81 = vld [vmem:[#allocation2 + $0x2c] sm:$0xf]
    %v82 = vld [vmem:[#allocation2 + $0x30] sm:$0xf]
    %v83 = vld [vmem:[#allocation2 + $0x34] sm:$0xf]
    %v84 = vld [vmem:[#allocation2 + $0x38] sm:$0xf]
    %v85 = vld [vmem:[#allocation2 + $0x3c] sm:$0xf]
    %s86 = scalar_lea.vmem [#allocation2], 64
    %v87 = vld [vmem:[%s86] sm:$0xf]
    %v88 = vld [vmem:[%s86 + $0x4] sm:$0xf]
    %v89 = vld [vmem:[%s86 + $0x8] sm:$0xf]
    %v90 = vld [vmem:[%s86 + $0xc] sm:$0xf]
    %v91 = vld [vmem:[%s86 + $0x10] sm:$0xf]
    %v92 = vld [vmem:[%s86 + $0x14] sm:$0xf]
    %v93 = vld [vmem:[%s86 + $0x18] sm:$0xf]
    %v94 = vld [vmem:[%s86 + $0x1c] sm:$0xf]
    %v95 = vld [vmem:[%s86 + $0x20] sm:$0xf]
    %v96 = vld [vmem:[%s86 + $0x24] sm:$0xf]
    %v97 = vld [vmem:[%s86 + $0x28] sm:$0xf]
    %v98 = vld [vmem:[%s86 + $0x2c] sm:$0xf]
    %v99 = vld [vmem:[%s86 + $0x30] sm:$0xf]
    %v100 = vld [vmem:[%s86 + $0x34] sm:$0xf]
    %v101 = vld [vmem:[%s86 + $0x38] sm:$0xf]
    %v102 = vld [vmem:[%s86 + $0x3c] sm:$0xf]
    %v103 = vld [vmem:[#allocation4] sm:$0xff]
    %v104 = vld [vmem:[#allocation4 + $0x8] sm:$0xff]
    %v105 = vld [vmem:[#allocation4 + $0x10] sm:$0xff]
    %v106 = vld [vmem:[#allocation4 + $0x18] sm:$0xff]
    %v107 = vld [vmem:[#allocation4 + $0x20] sm:$0xff]
    %v108 = vld [vmem:[#allocation4 + $0x28] sm:$0xff]
    %v109 = vld [vmem:[#allocation4 + $0x30] sm:$0xff]
    %v110 = vld [vmem:[#allocation4 + $0x38] sm:$0xff]
    %v111 = vld [vmem:[#allocation4 + $0x40] sm:$0xff]
    %v112 = vld [vmem:[#allocation4 + $0x48] sm:$0xff]
    %v113 = vld [vmem:[#allocation4 + $0x50] sm:$0xff]
    %v114 = vld [vmem:[#allocation4 + $0x58] sm:$0xff]
    %v115 = vld [vmem:[#allocation4 + $0x60] sm:$0xff]
    %v116 = vld [vmem:[#allocation4 + $0x68] sm:$0xff]
    %v117 = vld [vmem:[#allocation4 + $0x70] sm:$0xff]
    %v118 = vld [vmem:[#allocation4 + $0x78] sm:$0xff]
    %120 = vset.pattern.permute.xlu0 0
    %121 = vperm.xlu0 %120, %v68
    %v122 = vpop.permute.xlu0 %121
    %v124 = vlaneseq
    %v125 = vshrl.u32 %v124, 7
    %v126 = vsub.s32 0, %v125
    %v127 = vrot.slane %v69, %v126
    %v128 = vmul.f32 %v122, %v127
    %v129 = vlaneseq
    %v130 = vshrl.u32 %v129, 7
    %v131 = vsub.s32 2, %v130
    %v132 = vrot.slane %v69, %v131
    %v133 = vadd.f32 %v132, %v128
    %134 = vset.pattern.permute.xlu0 1
    %135 = vperm.xlu0 %134, %v68
    %v136 = vpop.permute.xlu0 %135
    %v138 = vlaneseq
    %v139 = vshrl.u32 %v138, 7
    %v140 = vsub.s32 1, %v139
    %v141 = vrot.slane %v69, %v140
    %v142 = vmul.f32 %v136, %v141
    %v143 = vadd.f32 %v133, %v142
    %v144 = vmax.f32 %v143, 0.0
    %v145 = vpack.c.bf16 %v144, %v144
    %v146 = vlaneseq
    %v147 = vshrl.u32 %v146, 7
    %v148 = vsub.s32 3, %v147
    %v149 = vrot.slane %v69, %v148
    %v166 = vunpack.c.l.b16 %v70
    %v167 = vunpack.c.l.b16 %v71
    %v168 = vunpack.c.l.b16 %v72
    %v169 = vunpack.c.l.b16 %v73
    %v170 = vunpack.c.l.b16 %v74
    %v171 = vunpack.c.l.b16 %v75
    %v172 = vunpack.c.l.b16 %v76
    %v173 = vunpack.c.l.b16 %v77
    %v174 = vunpack.c.l.b16 %v78
    %v175 = vunpack.c.l.b16 %v79
    %v176 = vunpack.c.l.b16 %v80
    %v177 = vunpack.c.l.b16 %v81
    %v178 = vunpack.c.l.b16 %v82
    %v179 = vunpack.c.l.b16 %v83
    %v180 = vunpack.c.l.b16 %v84
    %v181 = vunpack.c.l.b16 %v85
    %v182 = vpack.c.b16 %v167, %v166
    %v183 = vpack.c.b16 %v169, %v168
    %v184 = vpack.c.b16 %v171, %v170
    %v185 = vpack.c.b16 %v173, %v172
    %v186 = vpack.c.b16 %v175, %v174
    %v187 = vpack.c.b16 %v177, %v176
    %v188 = vpack.c.b16 %v179, %v178
    %v189 = vpack.c.b16 %v181, %v180
    %198 = vmatprep.subr.bf16.mxu0 0
    %199 = vmatpush1.bf16.msra.mxu0 %v189
    %200 = vmatprep.subr.bf16.mxu0 0
    %201 = vmatpush1.bf16.msra.mxu0 %v188
    %202 = vmatprep.subr.bf16.mxu0 0
    %203 = vmatpush1.bf16.msra.mxu0 %v187
    %204 = vmatprep.subr.bf16.mxu0 0
    %205 = vmatpush1.bf16.msra.mxu0 %v186
    %206 = vmatprep.subr.bf16.mxu0 0
    %207 = vmatpush1.bf16.msra.mxu0 %v185
    %208 = vmatprep.subr.bf16.mxu0 0
    %209 = vmatpush1.bf16.msra.mxu0 %v184
    %210 = vmatprep.subr.bf16.mxu0 0
    %211 = vmatpush1.bf16.msra.mxu0 %v183
    %212 = vmatprep.subr.bf16.mxu0 0
    %213 = vmatpush1.bf16.msra.mxu0 %v182
    %214 = vmatprep.subr.bf16.mxu0 0
    %215 = vmatpush2.bf16.msra.mxu0 0
    %216 = vmatprep.subr.bf16.mxu0 0
    %217 = vmatpush2.bf16.msra.mxu0 0
    %218 = vmatprep.subr.bf16.mxu0 0
    %219 = vmatpush2.bf16.msra.mxu0 0
    %220 = vmatprep.subr.bf16.mxu0 0
    %221 = vmatpush2.bf16.msra.mxu0 0
    %222 = vmatprep.subr.bf16.mxu0 0
    %223 = vmatpush2.bf16.msra.mxu0 0
    %224 = vmatprep.subr.bf16.mxu0 0
    %225 = vmatpush2.bf16.msra.mxu0 0
    %226 = vmatprep.subr.bf16.mxu0 0
    %227 = vmatpush2.bf16.msra.mxu0 0
    %228 = vmatprep.subr.bf16.mxu0 0
    %229 = vmatpush2.bf16.msra.mxu0 0
    %230 = vmatprep.mubr.bf16.mxu0 0
    %231 = vmatmul.mubr.bf16.gmra.mxu0 %v145
    %v232 = vpop.f32.mrf.mxu0
    %v233 = vadd.f32 %v149, %v232
    %v234 = vpop.f32.mrf.mxu0
    %v235 = vpop.f32.mrf.mxu0
    %v236 = vpop.f32.mrf.mxu0
    %237 = vdwg.mxu0
    %v238 = vmax.f32 %v233, 0.0
    %v239 = vpack.c.bf16 %v238, %v238
    %v240 = vlaneseq
    %v241 = vshrl.u32 %v240, 7
    %v242 = vsub.s32 4, %v241
    %v243 = vrot.slane %v69, %v242
    %v260 = vunpack.c.l.b16 %v87
    %v261 = vunpack.c.l.b16 %v88
    %v262 = vunpack.c.l.b16 %v89
    %v263 = vunpack.c.l.b16 %v90
    %v264 = vunpack.c.l.b16 %v91
    %v265 = vunpack.c.l.b16 %v92
    %v266 = vunpack.c.l.b16 %v93
    %v267 = vunpack.c.l.b16 %v94
    %v268 = vunpack.c.l.b16 %v95
    %v269 = vunpack.c.l.b16 %v96
    %v270 = vunpack.c.l.b16 %v97
    %v271 = vunpack.c.l.b16 %v98
    %v272 = vunpack.c.l.b16 %v99
    %v273 = vunpack.c.l.b16 %v100
    %v274 = vunpack.c.l.b16 %v101
    %v275 = vunpack.c.l.b16 %v102
    %v276 = vpack.c.b16 %v261, %v260
    %v277 = vpack.c.b16 %v263, %v262
    %v278 = vpack.c.b16 %v265, %v264
    %v279 = vpack.c.b16 %v267, %v266
    %v280 = vpack.c.b16 %v269, %v268
    %v281 = vpack.c.b16 %v271, %v270
    %v282 = vpack.c.b16 %v273, %v272
    %v283 = vpack.c.b16 %v275, %v274
    %292 = vmatprep.subr.bf16.mxu0 0
    %293 = vmatpush1.bf16.msra.mxu0 %v283
    %294 = vmatprep.subr.bf16.mxu0 0
    %295 = vmatpush1.bf16.msra.mxu0 %v282
    %296 = vmatprep.subr.bf16.mxu0 0
    %297 = vmatpush1.bf16.msra.mxu0 %v281
    %298 = vmatprep.subr.bf16.mxu0 0
    %299 = vmatpush1.bf16.msra.mxu0 %v280
    %300 = vmatprep.subr.bf16.mxu0 0
    %301 = vmatpush1.bf16.msra.mxu0 %v279
    %302 = vmatprep.subr.bf16.mxu0 0
    %303 = vmatpush1.bf16.msra.mxu0 %v278
    %304 = vmatprep.subr.bf16.mxu0 0
    %305 = vmatpush1.bf16.msra.mxu0 %v277
    %306 = vmatprep.subr.bf16.mxu0 0
    %307 = vmatpush1.bf16.msra.mxu0 %v276
    %308 = vmatprep.subr.bf16.mxu0 0
    %309 = vmatpush2.bf16.msra.mxu0 0
    %310 = vmatprep.subr.bf16.mxu0 0
    %311 = vmatpush2.bf16.msra.mxu0 0
    %312 = vmatprep.subr.bf16.mxu0 0
    %313 = vmatpush2.bf16.msra.mxu0 0
    %314 = vmatprep.subr.bf16.mxu0 0
    %315 = vmatpush2.bf16.msra.mxu0 0
    %316 = vmatprep.subr.bf16.mxu0 0
    %317 = vmatpush2.bf16.msra.mxu0 0
    %318 = vmatprep.subr.bf16.mxu0 0
    %319 = vmatpush2.bf16.msra.mxu0 0
    %320 = vmatprep.subr.bf16.mxu0 0
    %321 = vmatpush2.bf16.msra.mxu0 0
    %322 = vmatprep.subr.bf16.mxu0 0
    %323 = vmatpush2.bf16.msra.mxu0 0
    %324 = vmatprep.mubr.bf16.mxu0 0
    %325 = vmatmul.mubr.bf16.gmra.mxu0 %v239
    %v326 = vpop.f32.mrf.mxu0
    %v327 = vadd.f32 %v243, %v326
    %v328 = vpop.f32.mrf.mxu0
    %v329 = vpop.f32.mrf.mxu0
    %v330 = vpop.f32.mrf.mxu0
    %331 = vdwg.mxu0
    %v332 = vrot.slane %v327, 4
    %v333 = vadd.f32 %v327, %v332
    %v334 = vrot.slane %v333, 2
    %v335 = vadd.f32 %v333, %v334
    %v336 = vrot.slane %v335, 1
    %v337 = vadd.f32 %v335, %v336
    %v338 = vrcp.pop 8.0
    %v339 = vmul.f32 %v337, %v338
    %v341 = vrot.slane %v69, 5
    %343 = vmatprep.subr.mxu0 0.0
    %344 = vmatpush1.msra.mxu0 %v118
    %345 = vmatprep.subr.mxu0 0.0
    %346 = vmatpush1.msra.mxu0 %v117
    %347 = vmatprep.subr.mxu0 0.0
    %348 = vmatpush1.msra.mxu0 %v116
    %349 = vmatprep.subr.mxu0 0.0
    %350 = vmatpush1.msra.mxu0 %v115
    %351 = vmatprep.subr.mxu0 0.0
    %352 = vmatpush1.msra.mxu0 %v114
    %353 = vmatprep.subr.mxu0 0.0
    %354 = vmatpush1.msra.mxu0 %v113
    %355 = vmatprep.subr.mxu0 0.0
    %356 = vmatpush1.msra.mxu0 %v112
    %357 = vmatprep.subr.mxu0 0.0
    %358 = vmatpush1.msra.mxu0 %v111
    %359 = vmatprep.subr.mxu0 0.0
    %360 = vmatpush1.msra.mxu0 %v110
    %361 = vmatprep.subr.mxu0 0.0
    %362 = vmatpush1.msra.mxu0 %v109
    %363 = vmatprep.subr.mxu0 0.0
    %364 = vmatpush1.msra.mxu0 %v108
    %365 = vmatprep.subr.mxu0 0.0
    %366 = vmatpush1.msra.mxu0 %v107
    %367 = vmatprep.subr.mxu0 0.0
    %368 = vmatpush1.msra.mxu0 %v106
    %369 = vmatprep.subr.mxu0 0.0
    %370 = vmatpush1.msra.mxu0 %v105
    %371 = vmatprep.subr.mxu0 0.0
    %372 = vmatpush1.msra.mxu0 %v104
    %373 = vmatprep.subr.mxu0 0.0
    %374 = vmatpush1.msra.mxu0 %v103
    %375 = vmatprep.subr.mxu0 0.0
    %376 = vmatpush2.msra.mxu0 0.0
    %377 = vmatprep.subr.mxu0 0.0
    %378 = vmatpush2.msra.mxu0 0.0
    %379 = vmatprep.subr.mxu0 0.0
    %380 = vmatpush2.msra.mxu0 0.0
    %381 = vmatprep.subr.mxu0 0.0
    %382 = vmatpush2.msra.mxu0 0.0
    %383 = vmatprep.subr.mxu0 0.0
    %384 = vmatpush2.msra.mxu0 0.0
    %385 = vmatprep.subr.mxu0 0.0
    %386 = vmatpush2.msra.mxu0 0.0
    %387 = vmatprep.subr.mxu0 0.0
    %388 = vmatpush2.msra.mxu0 0.0
    %389 = vmatprep.subr.mxu0 0.0
    %390 = vmatpush2.msra.mxu0 0.0
    %391 = vmatprep.subr.mxu0 0.0
    %392 = vmatpush2.msra.mxu0 0.0
    %393 = vmatprep.subr.mxu0 0.0
    %394 = vmatpush2.msra.mxu0 0.0
    %395 = vmatprep.subr.mxu0 0.0
    %396 = vmatpush2.msra.mxu0 0.0
    %397 = vmatprep.subr.mxu0 0.0
    %398 = vmatpush2.msra.mxu0 0.0
    %399 = vmatprep.subr.mxu0 0.0
    %400 = vmatpush2.msra.mxu0 0.0
    %401 = vmatprep.subr.mxu0 0.0
    %402 = vmatpush2.msra.mxu0 0.0
    %403 = vmatprep.subr.mxu0 0.0
    %404 = vmatpush2.msra.mxu0 0.0
    %405 = vmatprep.subr.mxu0 0.0
    %406 = vmatpush2.msra.mxu0 0.0
    %407 = vmatprep.mubr.f32.mxu0 0.0
    %408 = vmatmul.mubr.f32.gmra.mxu0 %v339
    %v409 = vpop.f32.mrf.mxu0
    %v410 = vadd.f32 %v341, %v409
    %v411 = vpop.f32.mrf.mxu0
    %412 = vdwg.mxu0
    %v413 = vld [vmem:[%s1] sm:$0xff]
    %v414 = vld [vmem:[%s5] sm:$0xff]
    %v415 = vld [vmem:[#allocation6] sm:$0xf]
    %v416 = vld [vmem:[#allocation6 + $0x4] sm:$0xf]
    %v417 = vld [vmem:[#allocation6 + $0x8] sm:$0xf]
    %v418 = vld [vmem:[#allocation6 + $0xc] sm:$0xf]
    %v419 = vld [vmem:[#allocation6 + $0x10] sm:$0xf]
    %v420 = vld [vmem:[#allocation6 + $0x14] sm:$0xf]
    %v421 = vld [vmem:[#allocation6 + $0x18] sm:$0xf]
    %v422 = vld [vmem:[#allocation6 + $0x1c] sm:$0xf]
    %v423 = vld [vmem:[#allocation6 + $0x20] sm:$0xf]
    %v424 = vld [vmem:[#allocation6 + $0x24] sm:$0xf]
    %v425 = vld [vmem:[#allocation6 + $0x28] sm:$0xf]
    %v426 = vld [vmem:[#allocation6 + $0x2c] sm:$0xf]
    %v427 = vld [vmem:[#allocation6 + $0x30] sm:$0xf]
    %v428 = vld [vmem:[#allocation6 + $0x34] sm:$0xf]
    %v429 = vld [vmem:[#allocation6 + $0x38] sm:$0xf]
    %v430 = vld [vmem:[#allocation6 + $0x3c] sm:$0xf]
    %s431 = scalar_lea.vmem [#allocation6], 64
    %v432 = vld [vmem:[%s431] sm:$0xf]
    %v433 = vld [vmem:[%s431 + $0x4] sm:$0xf]
    %v434 = vld [vmem:[%s431 + $0x8] sm:$0xf]
    %v435 = vld [vmem:[%s431 + $0xc] sm:$0xf]
    %v436 = vld [vmem:[%s431 + $0x10] sm:$0xf]
    %v437 = vld [vmem:[%s431 + $0x14] sm:$0xf]
    %v438 = vld [vmem:[%s431 + $0x18] sm:$0xf]
    %v439 = vld [vmem:[%s431 + $0x1c] sm:$0xf]
    %v440 = vld [vmem:[%s431 + $0x20] sm:$0xf]
    %v441 = vld [vmem:[%s431 + $0x24] sm:$0xf]
    %v442 = vld [vmem:[%s431 + $0x28] sm:$0xf]
    %v443 = vld [vmem:[%s431 + $0x2c] sm:$0xf]
    %v444 = vld [vmem:[%s431 + $0x30] sm:$0xf]
    %v445 = vld [vmem:[%s431 + $0x34] sm:$0xf]
    %v446 = vld [vmem:[%s431 + $0x38] sm:$0xf]
    %v447 = vld [vmem:[%s431 + $0x3c] sm:$0xf]
    %449 = vset.pattern.permute.xlu0 0
    %450 = vperm.xlu0 %449, %v413
    %v451 = vpop.permute.xlu0 %450
    %v453 = vlaneseq
    %v454 = vshrl.u32 %v453, 7
    %v455 = vsub.s32 0, %v454
    %v456 = vrot.slane %v414, %v455
    %v457 = vmul.f32 %v451, %v456
    %v458 = vlaneseq
    %v459 = vshrl.u32 %v458, 7
    %v460 = vsub.s32 0, %v459
    %v461 = vrot.slane %v410, %v460
    %v462 = vadd.f32 %v461, %v457
    %v463 = vmax.f32 %v462, 0.0
    %v464 = vpack.c.bf16 %v463, %v463
    %v465 = vlaneseq
    %v466 = vshrl.u32 %v465, 7
    %v467 = vsub.s32 1, %v466
    %v468 = vrot.slane %v414, %v467
    %v485 = vunpack.c.l.b16 %v415
    %v486 = vunpack.c.l.b16 %v416
    %v487 = vunpack.c.l.b16 %v417
    %v488 = vunpack.c.l.b16 %v418
    %v489 = vunpack.c.l.b16 %v419
    %v490 = vunpack.c.l.b16 %v420
    %v491 = vunpack.c.l.b16 %v421
    %v492 = vunpack.c.l.b16 %v422
    %v493 = vunpack.c.l.b16 %v423
    %v494 = vunpack.c.l.b16 %v424
    %v495 = vunpack.c.l.b16 %v425
    %v496 = vunpack.c.l.b16 %v426
    %v497 = vunpack.c.l.b16 %v427
    %v498 = vunpack.c.l.b16 %v428
    %v499 = vunpack.c.l.b16 %v429
    %v500 = vunpack.c.l.b16 %v430
    %v501 = vpack.c.b16 %v486, %v485
    %v502 = vpack.c.b16 %v488, %v487
    %v503 = vpack.c.b16 %v490, %v489
    %v504 = vpack.c.b16 %v492, %v491
    %v505 = vpack.c.b16 %v494, %v493
    %v506 = vpack.c.b16 %v496, %v495
    %v507 = vpack.c.b16 %v498, %v497
    %v508 = vpack.c.b16 %v500, %v499
    %517 = vmatprep.subr.bf16.mxu0 0
    %518 = vmatpush1.bf16.msra.mxu0 %v508
    %519 = vmatprep.subr.bf16.mxu0 0
    %520 = vmatpush1.bf16.msra.mxu0 %v507
    %521 = vmatprep.subr.bf16.mxu0 0
    %522 = vmatpush1.bf16.msra.mxu0 %v506
    %523 = vmatprep.subr.bf16.mxu0 0
    %524 = vmatpush1.bf16.msra.mxu0 %v505
    %525 = vmatprep.subr.bf16.mxu0 0
    %526 = vmatpush1.bf16.msra.mxu0 %v504
    %527 = vmatprep.subr.bf16.mxu0 0
    %528 = vmatpush1.bf16.msra.mxu0 %v503
    %529 = vmatprep.subr.bf16.mxu0 0
    %530 = vmatpush1.bf16.msra.mxu0 %v502
    %531 = vmatprep.subr.bf16.mxu0 0
    %532 = vmatpush1.bf16.msra.mxu0 %v501
    %533 = vmatprep.subr.bf16.mxu0 0
    %534 = vmatpush2.bf16.msra.mxu0 0
    %535 = vmatprep.subr.bf16.mxu0 0
    %536 = vmatpush2.bf16.msra.mxu0 0
    %537 = vmatprep.subr.bf16.mxu0 0
    %538 = vmatpush2.bf16.msra.mxu0 0
    %539 = vmatprep.subr.bf16.mxu0 0
    %540 = vmatpush2.bf16.msra.mxu0 0
    %541 = vmatprep.subr.bf16.mxu0 0
    %542 = vmatpush2.bf16.msra.mxu0 0
    %543 = vmatprep.subr.bf16.mxu0 0
    %544 = vmatpush2.bf16.msra.mxu0 0
    %545 = vmatprep.subr.bf16.mxu0 0
    %546 = vmatpush2.bf16.msra.mxu0 0
    %547 = vmatprep.subr.bf16.mxu0 0
    %548 = vmatpush2.bf16.msra.mxu0 0
    %549 = vmatprep.mubr.bf16.mxu0 0
    %550 = vmatmul.mubr.bf16.gmra.mxu0 %v464
    %v551 = vpop.f32.mrf.mxu0
    %v552 = vadd.f32 %v468, %v551
    %v553 = vpop.f32.mrf.mxu0
    %v554 = vpop.f32.mrf.mxu0
    %v555 = vpop.f32.mrf.mxu0
    %556 = vdwg.mxu0
    %v557 = vmax.f32 %v552, 0.0
    %v558 = vpack.c.bf16 %v557, %v557
    %v559 = vlaneseq
    %v560 = vshrl.u32 %v559, 7
    %v561 = vsub.s32 2, %v560
    %v562 = vrot.slane %v414, %v561
    %v579 = vunpack.c.l.b16 %v432
    %v580 = vunpack.c.l.b16 %v433
    %v581 = vunpack.c.l.b16 %v434
    %v582 = vunpack.c.l.b16 %v435
    %v583 = vunpack.c.l.b16 %v436
    %v584 = vunpack.c.l.b16 %v437
    %v585 = vunpack.c.l.b16 %v438
    %v586 = vunpack.c.l.b16 %v439
    %v587 = vunpack.c.l.b16 %v440
    %v588 = vunpack.c.l.b16 %v441
    %v589 = vunpack.c.l.b16 %v442
    %v590 = vunpack.c.l.b16 %v443
    %v591 = vunpack.c.l.b16 %v444
    %v592 = vunpack.c.l.b16 %v445
    %v593 = vunpack.c.l.b16 %v446
    %v594 = vunpack.c.l.b16 %v447
    %v595 = vpack.c.b16 %v580, %v579
    %v596 = vpack.c.b16 %v582, %v581
    %v597 = vpack.c.b16 %v584, %v583
    %v598 = vpack.c.b16 %v586, %v585
    %v599 = vpack.c.b16 %v588, %v587
    %v600 = vpack.c.b16 %v590, %v589
    %v601 = vpack.c.b16 %v592, %v591
    %v602 = vpack.c.b16 %v594, %v593
    %611 = vmatprep.subr.bf16.mxu0 0
    %612 = vmatpush1.bf16.msra.mxu0 %v602
    %613 = vmatprep.subr.bf16.mxu0 0
    %614 = vmatpush1.bf16.msra.mxu0 %v601
    %615 = vmatprep.subr.bf16.mxu0 0
    %616 = vmatpush1.bf16.msra.mxu0 %v600
    %617 = vmatprep.subr.bf16.mxu0 0
    %618 = vmatpush1.bf16.msra.mxu0 %v599
    %619 = vmatprep.subr.bf16.mxu0 0
    %620 = vmatpush1.bf16.msra.mxu0 %v598
    %621 = vmatprep.subr.bf16.mxu0 0
    %622 = vmatpush1.bf16.msra.mxu0 %v597
    %623 = vmatprep.subr.bf16.mxu0 0
    %624 = vmatpush1.bf16.msra.mxu0 %v596
    %625 = vmatprep.subr.bf16.mxu0 0
    %626 = vmatpush1.bf16.msra.mxu0 %v595
    %627 = vmatprep.subr.bf16.mxu0 0
    %628 = vmatpush2.bf16.msra.mxu0 0
    %629 = vmatprep.subr.bf16.mxu0 0
    %630 = vmatpush2.bf16.msra.mxu0 0
    %631 = vmatprep.subr.bf16.mxu0 0
    %632 = vmatpush2.bf16.msra.mxu0 0
    %633 = vmatprep.subr.bf16.mxu0 0
    %634 = vmatpush2.bf16.msra.mxu0 0
    %635 = vmatprep.subr.bf16.mxu0 0
    %636 = vmatpush2.bf16.msra.mxu0 0
    %637 = vmatprep.subr.bf16.mxu0 0
    %638 = vmatpush2.bf16.msra.mxu0 0
    %639 = vmatprep.subr.bf16.mxu0 0
    %640 = vmatpush2.bf16.msra.mxu0 0
    %641 = vmatprep.subr.bf16.mxu0 0
    %642 = vmatpush2.bf16.msra.mxu0 0
    %643 = vmatprep.mubr.bf16.mxu0 0
    %644 = vmatmul.mubr.bf16.gmra.mxu0 %v558
    %v645 = vpop.f32.mrf.mxu0
    %v646 = vadd.f32 %v562, %v645
    %v647 = vpop.f32.mrf.mxu0
    %v648 = vpop.f32.mrf.mxu0
    %v649 = vpop.f32.mrf.mxu0
    %650 = vdwg.mxu0
    %651 = vst [vmem:[%s7] sm:$0xff] %v646
    // Predicated region
    $region42: #{cnmp_forward.1} parent=1 // pred_check
      _
    $region43: #{cnmp_forward.1} parent=1 // pred_check_branch
      %653 = sbr.rel (0) target = $region45
    $region44: #{cnmp_forward.1} parent=1 // pred_region
      _
    $region45: #{cnmp_forward.1} parent=1 // pred_fallthru
      _
    // Predicated region
    $region46: #{cnmp_forward.1} parent=1 // pred_check
      _
    $region47: #{cnmp_forward.1} parent=1 // pred_check_branch
      %655 = sbr.rel (0) target = $region49
    $region48: #{cnmp_forward.1} parent=1 // pred_region
      _
    $region49: #{cnmp_forward.1} parent=1 // pred_fallthru
      _
    %656 = vsyncpa [#allocation3], 1
    %657 = vsyncpa [#allocation5], 1

</llo_original>
